<compile_context>
chip_gen: v5e
topology: v5e:2x2
jax: 0.10.0
libtpu: 0.0.40
codegen_flags: <defaults>
</compile_context>

<pallas_src>
import functools

import jax
import jax.numpy as jnp
from jax.experimental import pallas as pl
from jax.experimental.pallas import tpu as pltpu

COMPUTE_DTYPE = jnp.bfloat16
LN_EPS = 1e-5

_VMEM_LIMIT = None


def _vmem_limit():
    """~75% of this generation's VMEM (v5e/v6e: 128 MiB, v7x: 64 MiB per core)."""
    global _VMEM_LIMIT
    if _VMEM_LIMIT is None:
        cap = 64 * 1024 * 1024                      # assume the smallest (v7x per-core)
        try:
            info = pltpu.get_tpu_info()
            cap = int(getattr(info, "vmem_capacity_bytes", cap)) or cap
        except Exception:
            pass
        _VMEM_LIMIT = min((cap // 4) * 3, 128 * 1024 * 1024)
    return _VMEM_LIMIT


def _round_up(x, m):
    return (x + m - 1) // m * m


def _pick_tk(K, max_tk=1024):
    """Largest K tile <= max_tk that exactly divides K (no garbage in the accumulator) and
    is lane-aligned (multiple of 128).  Falls back to a single full-K step."""
    if K <= max_tk:
        return K
    for tk in range(max_tk - max_tk % 128, 0, -128):
        if K % tk == 0:
            return tk
    return K


def _pick_tm(M, per_row_bytes, fixed_bytes, budget):
    """VMEM-aware row tile: <= 512, multiple of 8 (256-aligned when large), and split into
    >= 4 grid steps when M permits so dual-TC parts get >= 2 pipelined steps per core."""
    cap = (budget - fixed_bytes) // max(per_row_bytes, 1)
    tm = min(512, max(int(cap), 8), _round_up(M, 8))
    if M >= 4 * 256:
        tm = min(tm, max(256, _round_up(pl.cdiv(M, 4), 8)))
    if tm >= 256:
        tm = (tm // 256) * 256
    return max(8, (tm // 8) * 8)


# ----------------------------------------------------------------------------
# Fused matmul kernel: y = act( LN(x @ W [+ bias]) [+ residual | + LN(xs @ Wsc)] )
# Grid = (rows, K-steps); f32 accumulator scratch; epilogue on the last K step.
# ----------------------------------------------------------------------------

def _fused_mm_kernel(*refs, single_k, has_bias, has_ln, has_res, has_sc, act, eps):
    it = iter(refs)
    x_ref = next(it)
    w_ref = next(it)
    b_ref = next(it) if has_bias else None
    g_ref = next(it) if has_ln else None
    bb_ref = next(it) if has_ln else None
    r_ref = next(it) if has_res else None
    xs_ref = next(it) if has_sc else None
    ws_ref = next(it) if has_sc else None
    sg_ref = next(it) if has_sc else None
    sb_ref = next(it) if has_sc else None
    o_ref = next(it)
    acc_ref = None if single_k else next(it)

    def epilogue(y):
        if has_bias:
            y = y + b_ref[...].astype(jnp.float32)
        if has_ln:
            # one-pass LN statistics: var = E[y^2] - E[y]^2 (halves XLU reductions)
            mean = jnp.mean(y, axis=-1, keepdims=True)
            var = jnp.maximum(jnp.mean(y * y, axis=-1, keepdims=True) - mean * mean, 0.0)
            y = (y - mean) * jax.lax.rsqrt(var + eps)
            y = y * g_ref[...].astype(jnp.float32) + bb_ref[...].astype(jnp.float32)
        if has_res:
            y = y + r_ref[...].astype(jnp.float32)
        if has_sc:
            # fused shortcut projection + its LayerNorm (avoids a separate kernel + HBM trip)
            s = jnp.dot(xs_ref[...], ws_ref[...], preferred_element_type=jnp.float32)
            sm = jnp.mean(s, axis=-1, keepdims=True)
            sv = jnp.maximum(jnp.mean(s * s, axis=-1, keepdims=True) - sm * sm, 0.0)
            s = (s - sm) * jax.lax.rsqrt(sv + eps)
            s = s * sg_ref[...].astype(jnp.float32) + sb_ref[...].astype(jnp.float32)
            y = y + s
        if act == "silu":
            y = y * jax.nn.sigmoid(y)
        elif act == "gelu":
            y = jax.nn.gelu(y, approximate=True)    # tanh GELU (EUP); nn.GELU() uses erf
        o_ref[...] = y.astype(o_ref.dtype)

    part = jnp.dot(x_ref[...], w_ref[...], preferred_element_type=jnp.float32)

    if single_k:
        epilogue(part)
    else:
        k = pl.program_id(1)

        @pl.when(k == 0)
        def _():
            acc_ref[...] = jnp.zeros_like(acc_ref)

        acc_ref[...] += part

        @pl.when(k == pl.num_programs(1) - 1)
        def _():
            epilogue(acc_ref[...])


def fused_matmul(x, w, *, bias=None, ln=None, residual=None, shortcut=None,
                 act="none", eps=LN_EPS, out_dtype=None, max_tk=1024):
    """x: [M, K], w: [K, N].  ln = (gamma, beta) over N.  residual: [M, N].
    shortcut = (xs [M, Ks], wsc [Ks, N], gamma_sc, beta_sc) applied as + LN(xs @ wsc)."""
    M, K = x.shape
    N = w.shape[-1]
    out_dtype = x.dtype if out_dtype is None else out_dtype

    has_bias = bias is not None
    has_ln = ln is not None
    has_res = residual is not None
    has_sc = shortcut is not None

    tk = _pick_tk(K, max_tk)
    nk = max(1, K // tk)
    single_k = nk == 1

    # --- VMEM budget for the row tile (double-buffered pipelined operands + f32 acc) ---
    xb = jnp.dtype(x.dtype).itemsize
    wb = jnp.dtype(w.dtype).itemsize
    ob = jnp.dtype(out_dtype).itemsize
    fixed = 2 * tk * N * wb + 6 * N * 4                       # weight blocks + LN/bias rows
    per_row = 2 * tk * xb + 2 * N * ob + N * 4                # x, out, epilogue f32 temps
    if not single_k:
        per_row += N * 4                                      # accumulator scratch
    if has_res:
        per_row += 2 * N * jnp.dtype(residual.dtype).itemsize
    if has_sc:
        xs, wsc, gsc, bsc = shortcut
        Ks = xs.shape[-1]
        per_row += 2 * Ks * jnp.dtype(xs.dtype).itemsize
        fixed += 2 * Ks * N * jnp.dtype(wsc.dtype).itemsize + 2 * N * 4
    tm = _pick_tm(M, per_row, fixed, (_vmem_limit() * 4) // 5)
    grid_m = pl.cdiv(M, tm)

    inputs = [x, w]
    in_specs = [
        pl.BlockSpec((tm, tk), lambda i, k: (i, k)),
        pl.BlockSpec((tk, N), lambda i, k: (k, 0)),
    ]
    if has_bias:
        inputs.append(bias.reshape(1, N).astype(jnp.float32))
        in_specs.append(pl.BlockSpec((1, N), lambda i, k: (0, 0)))
    if has_ln:
        gamma, beta = ln
        inputs += [gamma.reshape(1, N).astype(jnp.float32),
                   beta.reshape(1, N).astype(jnp.float32)]
        in_specs += [pl.BlockSpec((1, N), lambda i, k: (0, 0)),
                     pl.BlockSpec((1, N), lambda i, k: (0, 0))]
    if has_res:
        inputs.append(residual)
        in_specs.append(pl.BlockSpec((tm, N), lambda i, k: (i, 0)))
    if has_sc:
        xs, wsc, gsc, bsc = shortcut
        Ks = xs.shape[-1]
        inputs += [xs, wsc, gsc.reshape(1, N).astype(jnp.float32),
                   bsc.reshape(1, N).astype(jnp.float32)]
        in_specs += [pl.BlockSpec((tm, Ks), lambda i, k: (i, 0)),
                     pl.BlockSpec((Ks, N), lambda i, k: (0, 0)),
                     pl.BlockSpec((1, N), lambda i, k: (0, 0)),
                     pl.BlockSpec((1, N), lambda i, k: (0, 0))]

    scratch = [] if single_k else [pltpu.VMEM((tm, N), jnp.float32)]

    kernel = functools.partial(
        _fused_mm_kernel, single_k=single_k, has_bias=has_bias, has_ln=has_ln,
        has_res=has_res, has_sc=has_sc, act=act, eps=eps)

    return pl.pallas_call(
        kernel,
        out_shape=jax.ShapeDtypeStruct((M, N), out_dtype),
        grid_spec=pltpu.PrefetchScalarGridSpec(
            num_scalar_prefetch=0,
            grid=(grid_m, nk),
            in_specs=in_specs,
            out_specs=pl.BlockSpec((tm, N), lambda i, k: (i, 0)),
            scratch_shapes=scratch,
        ),
        compiler_params=pltpu.CompilerParams(
            dimension_semantics=("parallel", "arbitrary"),
            vmem_limit_bytes=_vmem_limit()),
    )(*inputs)


# ----------------------------------------------------------------------------
# Fused 3x3 conv (stride 1, pad 1) + channel LayerNorm + SiLU.
# Input is a per-frame padded slab flattened to [Hp*Wp, C]; each of the 9 taps is a constant
# row shift of that slab, so the conv is 9 shifted MXU matmuls accumulated in f32.
# The kernel emits ONE bulk lane-dense store of the padded (H*Wp, N) result; the 2 garbage
# columns per row are stripped by a slice in the wrapper.
# ----------------------------------------------------------------------------

def _conv3x3_ln_kernel(x_ref, w_ref, g_ref, b_ref, o_ref, *, Wp, act, eps):
    # x_ref: [1, Hp*Wp, C]; w_ref: [9, C, N]; g/b: [1, N] f32; o_ref: [1, H*Wp, N]
    M = o_ref.shape[1]                      # H * Wp output rows (pad cols dropped by caller)
    acc = jnp.dot(x_ref[0, 0:M, :], w_ref[0], preferred_element_type=jnp.float32)
    for t in range(1, 9):
        dh, dw = divmod(t, 3)
        off = dh * Wp + dw
        acc = acc + jnp.dot(x_ref[0, off:off + M, :], w_ref[t],
                            preferred_element_type=jnp.float32)
    mean = jnp.mean(acc, axis=-1, keepdims=True)
    var = jnp.maximum(jnp.mean(acc * acc, axis=-1, keepdims=True) - mean * mean, 0.0)
    y = (acc - mean) * jax.lax.rsqrt(var + eps)
    y = y * g_ref[...] + b_ref[...]
    if act == "silu":
        y = y * jax.nn.sigmoid(y)
    o_ref[0, :, :] = y.astype(o_ref.dtype)   # single unmasked lane-dense store


def conv3x3_ln_act(x, w, gamma, beta, act="silu", eps=LN_EPS):
    """x: [NF, H, W, C], w: [3, 3, C, N] -> act(LN(conv3x3(x)))  as [NF, H, W, N]."""
    NF, H, W, C = x.shape
    N = w.shape[-1]
    Wp = W + 2
    Hp = H + 3                               # pad rows (1, 2): extra row covers tap overrun
    # NOTE: jnp.pad costs one extra round trip of the conv input; folding the halo into the
    # producing kernel's output layout is a possible further optimization.
    xp = jnp.pad(x, ((0, 0), (1, 2), (1, 1), (0, 0)))
    x_flat = xp.reshape(NF, Hp * Wp, C)
    w9 = w.reshape(9, C, N).astype(x.dtype)
    g = gamma.reshape(1, N).astype(jnp.float32)
    b = beta.reshape(1, N).astype(jnp.float32)

    out = pl.pallas_call(
        functools.partial(_conv3x3_ln_kernel, Wp=Wp, act=act, eps=eps),
        out_shape=jax.ShapeDtypeStruct((NF, H * Wp, N), x.dtype),
        grid_spec=pltpu.PrefetchScalarGridSpec(
            num_scalar_prefetch=0,
            grid=(NF,),
            in_specs=[
                pl.BlockSpec((1, Hp * Wp, C), lambda n: (n, 0, 0)),
                pl.BlockSpec((9, C, N), lambda n: (0, 0, 0)),
                pl.BlockSpec((1, N), lambda n: (0, 0)),
                pl.BlockSpec((1, N), lambda n: (0, 0)),
            ],
            out_specs=pl.BlockSpec((1, H * Wp, N), lambda n: (n, 0, 0)),
        ),
        compiler_params=pltpu.CompilerParams(
            dimension_semantics=("parallel",),
            vmem_limit_bytes=_vmem_limit()),
    )(x_flat, w9, g, b)
    # strip the 2 pad columns per row (cheap slice; kernel store stays lane-dense/unmasked)
    return out.reshape(NF, H, Wp, N)[:, :, :W, :]


# ----------------------------------------------------------------------------
# Conv3d sampler (kernel == stride == downsample, padding=1, bias) + SiLU.
# Patch extraction stays in XLA (pad + reshape + transpose); the matmul itself runs through
# the K-tiled fused kernel, so the (kt*kh*kw*C, Cout) weight is streamed in <=1024-wide
# K slices instead of one giant VMEM block.
# TODO(synk): gather the kt*kh*kw taps in-kernel (as conv3x3 does) to remove the transpose's
# extra HBM round trip of the pre-downsample activation.
# ----------------------------------------------------------------------------

def conv3d_sampler(x, w, b, downsample=(2, 2, 2)):
    # x: [B, T, H, W, C], w: [kt, kh, kw, Cin, Cout], b: [Cout]
    B, T, H, W, C = x.shape
    kt, kh, kw = downsample
    Cout = w.shape[-1]
    xp = jnp.pad(x, ((0, 0), (1, 1), (1, 1), (1, 1), (0, 0)))
    To = (T + 2 - kt) // kt + 1
    Ho = (H + 2 - kh) // kh + 1
    Wo = (W + 2 - kw) // kw + 1
    xp = xp[:, :To * kt, :Ho * kh, :Wo * kw, :]
    patches = xp.reshape(B, To, kt, Ho, kh, Wo, kw, C)
    patches = patches.transpose(0, 1, 3, 5, 2, 4, 6, 7).reshape(
        B * To * Ho * Wo, kt * kh * kw * C)
    y = fused_matmul(patches, w.reshape(kt * kh * kw * C, Cout), bias=b, act="silu")
    return y.reshape(B, To, Ho, Wo, Cout)


# ----------------------------------------------------------------------------
# RegStage-style spatial interaction blocks (s1 / s2)
# ----------------------------------------------------------------------------

def reg_block(x, p):
    """Bottleneck-style block: [1x1 -> LN -> SiLU] -> [3x3 -> LN -> SiLU] ->
    [1x1 -> LN -> +shortcut -> SiLU].  Each bracket is one fused Pallas kernel; the
    channel-changing shortcut (1x1 + LN) is fused into the last kernel's epilogue.
    # TODO(synk): timm RegStage Bottleneck internals (group-conv width, SE block, exact norm
    # eps) are external to the provided source and approximated here.
    """
    NF, H, W, Cin = x.shape
    Cout = p["w3"].shape[-1]
    x_flat = x.reshape(-1, Cin)

    h = fused_matmul(x_flat, p["w1"], ln=(p["g1"], p["b1"]), act="silu")
    h = conv3x3_ln_act(h.reshape(NF, H, W, Cout), p["w2"], p["g2"], p["b2"], act="silu")
    h_flat = h.reshape(-1, Cout)

    if "wsc" in p:
        y = fused_matmul(h_flat, p["w3"], ln=(p["g3"], p["b3"]),
                         shortcut=(x_flat, p["wsc"], p["gsc"], p["bsc"]), act="silu")
    else:
        y = fused_matmul(h_flat, p["w3"], ln=(p["g3"], p["b3"]),
                         residual=x_flat, act="silu")
    return y.reshape(NF, H, W, Cout)


def reg_stage(x, blocks):
    for p in blocks:
        x = reg_block(x, p)
    return x


# ----------------------------------------------------------------------------
# Parameter construction (deterministic, synthetic); matmul weights in bf16.
# ----------------------------------------------------------------------------

def _init_block(key, cin, cout):
    ks = jax.random.split(key, 4)
    p = {
        "w1": (jax.random.normal(ks[0], (cin, cout), jnp.float32) / jnp.sqrt(cin)
               ).astype(COMPUTE_DTYPE),
        "g1": jnp.ones((cout,), jnp.float32), "b1": jnp.zeros((cout,), jnp.float32),
        "w2": (jax.random.normal(ks[1], (3, 3, cout, cout), jnp.float32) / jnp.sqrt(9 * cout)
               ).astype(COMPUTE_DTYPE),
        "g2": jnp.ones((cout,), jnp.float32), "b2": jnp.zeros((cout,), jnp.float32),
        "w3": (jax.random.normal(ks[2], (cout, cout), jnp.float32) / jnp.sqrt(cout)
               ).astype(COMPUTE_DTYPE),
        "g3": jnp.ones((cout,), jnp.float32), "b3": jnp.zeros((cout,), jnp.float32),
    }
    if cin != cout:
        p["wsc"] = (jax.random.normal(ks[3], (cin, cout), jnp.float32) / jnp.sqrt(cin)
                    ).astype(COMPUTE_DTYPE)
        p["gsc"] = jnp.ones((cout,), jnp.float32)
        p["bsc"] = jnp.zeros((cout,), jnp.float32)
    return p


def _init_linear(key, fan_in, fan_out):
    k1, k2 = jax.random.split(key)
    w = (jax.random.normal(k1, (fan_in, fan_out), jnp.float32) / jnp.sqrt(fan_in)
         ).astype(COMPUTE_DTYPE)
    b = jax.random.normal(k2, (fan_out,), jnp.float32) * 0.01
    return w, b


def init_stc_connector_params(key, encoder_hidden, hidden, depth=4, mlp_depth=2,
                              downsample=(2, 2, 2)):
    ks = jax.random.split(key, 6)
    params = {}
    params["s1"] = [
        _init_block(k, encoder_hidden if i == 0 else hidden, hidden)
        for i, k in enumerate(jax.random.split(ks[0], depth))
    ]
    kt, kh, kw = downsample
    params["sampler_w"] = (jax.random.normal(ks[1], (kt, kh, kw, hidden, hidden), jnp.float32)
                           / jnp.sqrt(kt * kh * kw * hidden)).astype(COMPUTE_DTYPE)
    params["sampler_b"] = jax.random.normal(ks[2], (hidden,), jnp.float32) * 0.01
    params["s2"] = [_init_block(k, hidden, hidden) for k in jax.random.split(ks[3], depth)]
    # readout = build_mlp(mlp_depth, hidden, hidden): Linear (+ GELU + Linear)*(mlp_depth-1)
    mlp_keys = jax.random.split(ks[4], mlp_depth)
    readout = [_init_linear(mlp_keys[0], hidden, hidden)]
    for i in range(1, mlp_depth):
        readout.append(_init_linear(mlp_keys[i], hidden, hidden))
    params["readout"] = readout
    return params


# ----------------------------------------------------------------------------
# STCConnector forward
# ----------------------------------------------------------------------------

def stc_connector_forward(params, x, downsample=(2, 2, 2)):
    """x: [b, t, h, w, d] or [b, t, l, d]  ->  [b, new_t*new_h*new_w, hidden]."""
    orig_dtype = x.dtype
    if x.ndim == 4:
        b, t, l, d = x.shape
        hw = int(round(l ** 0.5))
        x = x.reshape(b, t, hw, hw, d)
    b, t, h, w, d = x.shape
    x = x.astype(COMPUTE_DTYPE)

    # s1: spatial interaction per frame
    y = reg_stage(x.reshape(b * t, h, w, d), params["s1"])
    hidden = y.shape[-1]
    y = y.reshape(b, t, h, w, hidden)

    # sampler: Conv3d (kernel=stride=downsample, padding=1) + SiLU
    y = conv3d_sampler(y, params["sampler_w"], params["sampler_b"], downsample)
    _, new_t, nh, nw, _ = y.shape

    # s2: spatial interaction per (downsampled) frame
    y = reg_stage(y.reshape(b * new_t, nh, nw, hidden), params["s2"])

    # readout MLP: Linear -> GELU -> ... -> Linear (fused bias + GELU epilogues)
    flat = y.reshape(b * new_t * nh * nw, hidden)
    n_lin = len(params["readout"])
    for i, (w_, b_) in enumerate(params["readout"]):
        last = i == n_lin - 1
        flat = fused_matmul(flat, w_, bias=b_,
                            act="none" if last else "gelu",
                            out_dtype=orig_dtype if last else None)
    return flat.reshape(b, new_t * nh * nw, -1)


# ----------------------------------------------------------------------------

if __name__ == "__main__":
    key = jax.random.PRNGKey(0)
    k_param, k_x, k_a, k_b = jax.random.split(key, 4)

    # Quick numerical self-check of the K-tiled accumulator path against XLA's bf16 matmul.
    xa = jax.random.normal(k_a, (256, 512), jnp.float32).astype(COMPUTE_DTYPE)
    wa = (jax.random.normal(k_b, (512, 128), jnp.float32) / jnp.sqrt(512.0)).astype(COMPUTE_DTYPE)
    ya = fused_matmul(xa, wa, act="none", out_dtype=jnp.float32, max_tk=128)   # 4 K steps
    ref = jnp.dot(xa, wa, preferred_element_type=jnp.float32)
    assert jnp.allclose(ya, ref, atol=1e-2, rtol=1e-2), float(jnp.max(jnp.abs(ya - ref)))

    B, T, H, W = 2, 4, 8, 8
    ENC_HIDDEN, HIDDEN = 48, 32          # config.mm_hidden_size, config.hidden_size
    DOWNSAMPLE = (2, 2, 2)

    params = init_stc_connector_params(k_param, ENC_HIDDEN, HIDDEN,
                                       depth=4, mlp_depth=2, downsample=DOWNSAMPLE)
    x = jax.random.normal(k_x, (B, T, H, W, ENC_HIDDEN), jnp.float32)

    fwd = jax.jit(functools.partial(stc_connector_forward, downsample=DOWNSAMPLE))
    out = jax.block_until_ready(fwd(params, x))

    new_t = T // 2 + 1      # conv3d k=s=2, pad=1 (even dims)
    new_hw = H // 2 + 1
    assert out.shape == (B, new_t * new_hw * new_hw, HIDDEN), out.shape
    assert bool(jnp.all(jnp.isfinite(out)))
    print("KERNEL_OK")
</pallas_src>

<mosaic_0001>
module attributes {stable_mosaic.version = 11 : i64} {
  func.func @_fused_mm_kernel(%arg0: i32, %arg1: i32, %arg2: memref<256x128xbf16, #tpu.memory_space<vmem>>, %arg3: memref<128x128xbf16, #tpu.memory_space<vmem>>, %arg4: memref<256x128xf32, #tpu.memory_space<vmem>>, %arg5: memref<256x128xf32, #tpu.memory_space<vmem>>) attributes {dimension_semantics = [#tpu.dimension_semantics<parallel>, #tpu.dimension_semantics<arbitrary>], iteration_bounds = array<i64: 1, 4>, scalar_prefetch = 0 : i64, scratch_operands = 1 : i64, tpu.core_type = #tpu.core_type<tc>, window_params = [{transform_indices = @transform_0, window_bounds = array<i64: 256, 128>}, {transform_indices = @transform_1, window_bounds = array<i64: 128, 128>}, {transform_indices = @transform_2, window_bounds = array<i64: 256, 128>}]} {
    %c0 = arith.constant 0 : index
    %c0_0 = arith.constant 0 : index
    %0 = vector.load %arg2[%c0, %c0_0] : memref<256x128xbf16, #tpu.memory_space<vmem>>, vector<256x128xbf16>
    %c0_1 = arith.constant 0 : index
    %c0_2 = arith.constant 0 : index
    %1 = vector.load %arg3[%c0_1, %c0_2] : memref<128x128xbf16, #tpu.memory_space<vmem>>, vector<128x128xbf16>
    %cst = arith.constant dense<0.000000e+00> : vector<256x128xf32>
    %2 = tpu.matmul %0, %1, %cst {dimension_numbers = #tpu.dot_dimension_numbers<[1], [0], [0], [1], [0, 0, 1, 1], [], []>} : vector<256x128xbf16>, vector<128x128xbf16>, vector<256x128xf32> -> vector<256x128xf32>
    %c0_i32 = arith.constant 0 : i32
    %3 = arith.cmpi eq, %arg1, %c0_i32 : i32
    %4 = arith.extui %3 : i1 to i32
    %c0_i32_3 = arith.constant 0 : i32
    %5 = arith.cmpi ne, %4, %c0_i32_3 : i32
    scf.if %5 {
      %cst_9 = arith.constant 0.000000e+00 : f32
      %12 = vector.broadcast %cst_9 : f32 to vector<256x128xf32>
      %c0_10 = arith.constant 0 : index
      %c0_11 = arith.constant 0 : index
      %13 = vector.load %arg5[%c0_10, %c0_11] : memref<256x128xf32, #tpu.memory_space<vmem>>, vector<256x128xf32>
      tpu.vector_store %arg5[%c0_10, %c0_11], %12 {strides = array<i32>} : memref<256x128xf32, #tpu.memory_space<vmem>>, vector<256x128xf32>,
    } else {
    }
    %c0_4 = arith.constant 0 : index
    %c0_5 = arith.constant 0 : index
    %6 = vector.load %arg5[%c0_4, %c0_5] : memref<256x128xf32, #tpu.memory_space<vmem>>, vector<256x128xf32>
    %7 = arith.addf %6, %2 : vector<256x128xf32>
    %c0_6 = arith.constant 0 : index
    %c0_7 = arith.constant 0 : index
    %8 = vector.load %arg5[%c0_6, %c0_7] : memref<256x128xf32, #tpu.memory_space<vmem>>, vector<256x128xf32>
    tpu.vector_store %arg5[%c0_6, %c0_7], %7 {strides = array<i32>} : memref<256x128xf32, #tpu.memory_space<vmem>>, vector<256x128xf32>,
    %c3_i32 = arith.constant 3 : i32
    %9 = arith.cmpi eq, %arg1, %c3_i32 : i32
    %10 = arith.extui %9 : i1 to i32
    %c0_i32_8 = arith.constant 0 : i32
    %11 = arith.cmpi ne, %10, %c0_i32_8 : i32
    scf.if %11 {
      %c0_9 = arith.constant 0 : index
      %c0_10 = arith.constant 0 : index
      %12 = vector.load %arg5[%c0_9, %c0_10] : memref<256x128xf32, #tpu.memory_space<vmem>>, vector<256x128xf32>
      %c0_11 = arith.constant 0 : index
      %c0_12 = arith.constant 0 : index
      %13 = vector.load %arg4[%c0_11, %c0_12] : memref<256x128xf32, #tpu.memory_space<vmem>>, vector<256x128xf32>
      tpu.vector_store %arg4[%c0_11, %c0_12], %12 {strides = array<i32>} : memref<256x128xf32, #tpu.memory_space<vmem>>, vector<256x128xf32>,
    } else {
    }
    return
  }
  func.func @transform_0(%arg0: i32, %arg1: i32) -> (i32, i32) {
    %c0_i32 = arith.constant 0 : i32
    return %arg0, %arg1 : i32, i32
  }
  func.func @transform_1(%arg0: i32, %arg1: i32) -> (i32, i32) {
    %c0_i32 = arith.constant 0 : i32
    %c0_i32_0 = arith.constant 0 : i32
    return %arg1, %c0_i32 : i32, i32
  }
  func.func @transform_2(%arg0: i32, %arg1: i32) -> (i32, i32) {
    %c0_i32 = arith.constant 0 : i32
    %c0_i32_0 = arith.constant 0 : i32
    return %arg0, %c0_i32 : i32, i32
  }
}

</mosaic_0001>

<llo_original>
// kernel: tpu_custom_call.1
$region0: #{tpu_custom_call.1}
  #allocation0 [shape = 'u32[]', space=smem, size = 0x4, offset = 0x4, fixed_abs, tag = 'smem constant byte address 0x4 - core index']
  #allocation1 [shape = 'u32[72,128]{1,0:T(1,128)}', space=vmem, size = 0x9000, scoped, tag = 'internal scratch']
  #allocation2 [shape = 'f32[256,128]{1,0:T(8,128)}', space=vmem, size = 0x20000, scoped, tag = 'scratch operand']
  %s0 = inlined_call_operand.hbm [shape: bf16[256,512], index: 0, kind: input, shape index: {}]
  %s1 = inlined_call_operand.hbm [shape: bf16[512,128], index: 1, kind: input, shape index: {}]
  %s2 = inlined_call_operand.hbm [shape: f32[256,128], index: 2, kind: output, shape index: {}]
  %s3 = sld [smem:[#allocation0]]
  $region57: #{tpu_custom_call.1} parent=0
    _
  %s5 = ssub.s32 1, %s3
  %s6 = scalar_select 0, %s5, %s3
  $region1: #{tpu_custom_call.1} parent=0
    #allocation3 [shape = 'u8[131072]{0}', space=vmem, size = 0x20000, scoped, tag = 'input window, operand 0']
    #allocation4 [shape = 's32[2]{0}', space=sflag, size = 0x8, scoped, tag = 'scoped memory for tpu_custom_call.1']
    #allocation5 [shape = 's32[2]{0}', space=sflag, size = 0x8, scoped, tag = 'scoped memory for tpu_custom_call.1']
    #allocation6 [shape = 'u8[65536]{0}', space=vmem, size = 0x10000, scoped, tag = 'input window, operand 1']
    #allocation7 [shape = 's32[2]{0}', space=sflag, size = 0x8, scoped, tag = 'scoped memory for tpu_custom_call.1']
    #allocation8 [shape = 'u8[131072]{0}', space=vmem, size = 0x20000, scoped, tag = 'output window, operand 0, single buffered']
    %7 = vsyncpa [#allocation4], 0
    %s8 = scalar_lea.sflag [#allocation4], 1
    %9 = vsyncpa %s8, 0
    %10 = vsyncpa [#allocation7], 0
    %s11 = scalar_lea.sflag [#allocation7], 1
    %12 = vsyncpa %s11, 0
    %13 = vsyncpa [#allocation5], 0
    loop: start=0, step=1, limit=6
    $region2: #{tpu_custom_call.1} parent=1 // loop_pre_header
      _
    $region3: #{tpu_custom_call.1} parent=1 // loop_header
      %s15 = sphi 0, %s19
      %p16 = scmp.ge.s32.totalorder %s15, 6
      %s22 = sphi 0, %s34
      %s23 = sphi 0, %s30
      %s24 = sphi 0, %s22
      %s25 = sphi 0, %s23
      %s26 = sphi 0, %s24
      %s27 = sphi 0, %s25
      %s39 = sphi 0, %s41
      %s42 = sphi 0, %s39
      %s43 = sphi 0, %s42
      %s59 = sphi 0, %s43
      %s65 = sphi 0, %s67
      %s68 = sphi 0, %s65
      %s69 = sphi 0, %s68
      %s85 = sphi 0, %s69
      %s91 = sphi 0, %s93
      %s94 = sphi 0, %s91
      %s95 = sphi 0, %s94
      %s111 = sphi 0, %s95
    $region4: #{tpu_custom_call.1} parent=1 // loop_header_branch
      %18 = sbr.rel (%p16) target = $region8
    $region5: #{tpu_custom_call.1} parent=1 // loop_body
      %s20 = ssub.s32 %s15, 1
      %s21 = ssub.s32 %s15, 2
      %s28 = sadd.s32 1, %s23
      %p29 = scmp.ge.s32.totalorder %s28, 4
      %s30 = scalar_select %p29, 0, %s28
      %s31 = sadd.s32 1, %s22
      %s32 = scalar_select %p29, %s31, %s22
      %p33 = scmp.ge.s32.totalorder %s32, 1
      %s34 = scalar_select %p33, 0, %s32
      %s35 = ssub.s32 %s22, %s34
      %s36 = ssub.s32 %s23, %s30
      %s37 = sor.u32 %s35, %s36
      %p38 = scmp.eq.s32.totalorder %s37, 0
      %s40 = sadd.s32 %s39, 1
      %s41 = scalar_select %p38, %s39, %s40
      %p44 = pneg %p38
      %p45 = scmp.eq.s32.totalorder %s15, 3
      %p46 = por %p44, %p45
      %p47 = scmp.ne.s32.totalorder %s39, %s42
      %p48 = scmp.eq.s32.totalorder %s15, 0
      %p49 = por %p47, %p48
      %p50 = scmp.ne.s32.totalorder %s39, %s42
      %p51 = scmp.eq.s32.totalorder %s20, 3
      %p52 = por %p50, %p51
      %p53 = scmp.ne.s32.totalorder %s42, %s43
      %p54 = scmp.eq.s32.totalorder %s20, 0
      %p55 = por %p53, %p54
      %p56 = scmp.ne.s32.totalorder %s42, %s43
      %p57 = scmp.eq.s32.totalorder %s21, 3
      %p58 = por %p56, %p57
      %p60 = scmp.ne.s32.totalorder %s43, %s59
      %p61 = scmp.eq.s32.totalorder %s21, 0
      %p62 = por %p60, %p61
      %s63 = ssub.s32 %s23, %s30
      %p64 = scmp.eq.s32.totalorder %s63, 0
      %s66 = sadd.s32 %s65, 1
      %s67 = scalar_select %p64, %s65, %s66
      %p70 = pneg %p64
      %p71 = scmp.eq.s32.totalorder %s15, 3
      %p72 = por %p70, %p71
      %p73 = scmp.ne.s32.totalorder %s65, %s68
      %p74 = scmp.eq.s32.totalorder %s15, 0
      %p75 = por %p73, %p74
      %p76 = scmp.ne.s32.totalorder %s65, %s68
      %p77 = scmp.eq.s32.totalorder %s20, 3
      %p78 = por %p76, %p77
      %p79 = scmp.ne.s32.totalorder %s68, %s69
      %p80 = scmp.eq.s32.totalorder %s20, 0
      %p81 = por %p79, %p80
      %p82 = scmp.ne.s32.totalorder %s68, %s69
      %p83 = scmp.eq.s32.totalorder %s21, 3
      %p84 = por %p82, %p83
      %p86 = scmp.ne.s32.totalorder %s69, %s85
      %p87 = scmp.eq.s32.totalorder %s21, 0
      %p88 = por %p86, %p87
      %s89 = ssub.s32 %s22, %s34
      %p90 = scmp.eq.s32.totalorder %s89, 0
      %s92 = sadd.s32 %s91, 1
      %s93 = scalar_select %p90, %s91, %s92
      %p96 = pneg %p90
      %p97 = scmp.eq.s32.totalorder %s15, 3
      %p98 = por %p96, %p97
      %p99 = scmp.ne.s32.totalorder %s91, %s94
      %p100 = scmp.eq.s32.totalorder %s15, 0
      %p101 = por %p99, %p100
      %p102 = scmp.ne.s32.totalorder %s91, %s94
      %p103 = scmp.eq.s32.totalorder %s20, 3
      %p104 = por %p102, %p103
      %p105 = scmp.ne.s32.totalorder %s94, %s95
      %p106 = scmp.eq.s32.totalorder %s20, 0
      %p107 = por %p105, %p106
      %p108 = scmp.ne.s32.totalorder %s94, %s95
      %p109 = scmp.eq.s32.totalorder %s21, 3
      %p110 = por %p108, %p109
      %p112 = scmp.ne.s32.totalorder %s95, %s111
      %p113 = scmp.eq.s32.totalorder %s21, 0
      %p114 = por %p112, %p113
      %p115 = scmp.le.s32.totalorder 1, %s15
      %p116 = scmp.lt.s32.totalorder %s15, 5
      %p117 = pnand %p115, %p116
      %p118 = pneg %p117
      // Predicated region
      $region9: #{tpu_custom_call.1} parent=5 // pred_check
        _
      $region10: #{tpu_custom_call.1} parent=5 // pred_check_branch
        %120 = sbr.rel (%p117) target = $region12
      $region11: #{tpu_custom_call.1} parent=5 // pred_region
        %s121 = ssub.s32 %s15, 1
      $region12: #{tpu_custom_call.1} parent=5 // pred_fallthru
        _
      %p122 = scmp.lt.s32.totalorder %s15, 4
      // Predicated region
      $region13: #{tpu_custom_call.1} parent=5 // pred_check
        %p123 = pneg %p122
      $region14: #{tpu_custom_call.1} parent=5 // pred_check_branch
        %125 = sbr.rel (%p123) target = $region16
      $region15: #{tpu_custom_call.1} parent=5 // pred_region
        // Predicated region
        $region17: #{tpu_custom_call.1} parent=15 // pred_check
          %p126 = pneg %p49
        $region18: #{tpu_custom_call.1} parent=15 // pred_check_branch
          %128 = sbr.rel (%p126) target = $region20
        $region19: #{tpu_custom_call.1} parent=15 // pred_region
          %s129 = sand.u32 %s39, 1
          %s130 = scalar_lea.sflag [#allocation4], %s129
          %s131 = sand.u32 %s39, 1
          %s132 = smul.addr %s131, 128
          %s133 = scalar_lea.vmem [#allocation3], %s132
          %s134 = smul.u32 32, %s22
          %136 = vsyncadd %s130, 0
          %s137 = smul.addr %s134, 4
          %s138 = sadd.s32 %s23, %s137
          %s139 = smul.addr %s138, 4
          %s140 = scalar_lea.hbm %s0, %s139
          %s141 = sshll.u32 %s140, 4
          %s142 = int_to_ptr.hbm [resolvable:$true] %s141
          %s143 = sshll.u32 %s133, 4
          %s144 = int_to_ptr.vmem [resolvable:$true] %s143
          %149 = dma.hbm_to_vmem [thread:$0]  %s142, 2048, %s144, %s130, 256, 64, 4
        $region20: #{tpu_custom_call.1} parent=15 // pred_fallthru
          _
        // Predicated region
        $region21: #{tpu_custom_call.1} parent=15 // pred_check
          %p150 = pneg %p75
        $region22: #{tpu_custom_call.1} parent=15 // pred_check_branch
          %152 = sbr.rel (%p150) target = $region24
        $region23: #{tpu_custom_call.1} parent=15 // pred_region
          %s153 = sand.u32 %s65, 1
          %s154 = scalar_lea.sflag [#allocation7], %s153
          %s155 = sand.u32 %s65, 1
          %s156 = smul.addr %s155, 64
          %s157 = scalar_lea.vmem [#allocation6], %s156
          %s158 = smul.u32 16, %s23
          %160 = vsyncadd %s154, 0
          %s161 = smul.addr %s158, 4
          %s162 = scalar_lea.hbm %s1, %s161
          %s163 = sshll.u32 %s162, 4
          %s164 = int_to_ptr.hbm [resolvable:$true] %s163
          %s165 = sshll.u32 %s157, 4
          %s166 = int_to_ptr.vmem [resolvable:$true] %s165
          %171 = dma.hbm_to_vmem [thread:$0]  %s164, 1024, %s166, %s154, 64, 64, 4
        $region24: #{tpu_custom_call.1} parent=15 // pred_fallthru
          _
      $region16: #{tpu_custom_call.1} parent=5 // pred_fallthru
        _
      %p172 = scmp.le.s32.totalorder 1, %s15
      %p173 = scmp.lt.s32.totalorder %s15, 5
      %p174 = pnand %p172, %p173
      %p175 = pneg %p174
      // Predicated region
      $region25: #{tpu_custom_call.1} parent=5 // pred_check
        _
      $region26: #{tpu_custom_call.1} parent=5 // pred_check_branch
        %177 = sbr.rel (%p174) target = $region28
      $region27: #{tpu_custom_call.1} parent=5 // pred_region
        %s178 = ssub.s32 %s15, 1
        %s179 = sand.u32 %s42, 1
        %s180 = scalar_lea.sflag [#allocation4], %s179
        %s181 = sand.u32 %s42, 1
        %s182 = smul.addr %s181, 128
        %s183 = scalar_lea.vmem [#allocation3], %s182
        // Predicated region
        $region29: #{tpu_custom_call.1} parent=27 // pred_check
          %p184 = pneg %p55
        $region30: #{tpu_custom_call.1} parent=27 // pred_check_branch
          %186 = sbr.rel (%p184) target = $region32
        $region31: #{tpu_custom_call.1} parent=27 // pred_region
          %188 = dma.done %s180, 2048
        $region32: #{tpu_custom_call.1} parent=27 // pred_fallthru
          _
        %s189 = sand.u32 %s68, 1
        %s190 = scalar_lea.sflag [#allocation7], %s189
        %s191 = sand.u32 %s68, 1
        %s192 = smul.addr %s191, 64
        %s193 = scalar_lea.vmem [#allocation6], %s192
        // Predicated region
        $region33: #{tpu_custom_call.1} parent=27 // pred_check
          %p194 = pneg %p81
        $region34: #{tpu_custom_call.1} parent=27 // pred_check_branch
          %196 = sbr.rel (%p194) target = $region36
        $region35: #{tpu_custom_call.1} parent=27 // pred_region
          %198 = dma.done %s190, 1024
        $region36: #{tpu_custom_call.1} parent=27 // pred_fallthru
          _
        %s199 = sand.u32 %s42, 1
        %s200 = scalar_lea.sflag [#allocation4], %s199
        %s201 = sand.u32 %s42, 1
        %s202 = smul.addr %s201, 128
        %s203 = scalar_lea.vmem [#allocation3], %s202
        %p204 = pneg %p55
        %p205 = pneg %p52
        %s206 = sand.u32 %s68, 1
        %s207 = scalar_lea.sflag [#allocation7], %s206
        %s208 = sand.u32 %s68, 1
        %s209 = smul.addr %s208, 64
        %s210 = scalar_lea.vmem [#allocation6], %s209
        %p211 = pneg %p81
        %p212 = pneg %p78
        %p213 = pneg %p107
        %p214 = pneg %p104
        %s215 = smul.u32 32, %s24
        %s216 = smul.u32 16, %s25
        %s217 = smul.u32 32, %s24
        %v218 = vld [vmem:[%s183] sm:$0xf]
        %v219 = vld [vmem:[%s183 + $0x4] sm:$0xf]
        %v220 = vld [vmem:[%s183 + $0x8] sm:$0xf]
        %v221 = vld [vmem:[%s183 + $0xc] sm:$0xf]
        %v222 = vld [vmem:[%s183 + $0x10] sm:$0xf]
        %v223 = vld [vmem:[%s183 + $0x14] sm:$0xf]
        %v224 = vld [vmem:[%s183 + $0x18] sm:$0xf]
        %v225 = vld [vmem:[%s183 + $0x1c] sm:$0xf]
        %v226 = vld [vmem:[%s183 + $0x20] sm:$0xf]
        %v227 = vld [vmem:[%s183 + $0x24] sm:$0xf]
        %v228 = vld [vmem:[%s183 + $0x28] sm:$0xf]
        %v229 = vld [vmem:[%s183 + $0x2c] sm:$0xf]
        %v230 = vld [vmem:[%s183 + $0x30] sm:$0xf]
        %v231 = vld [vmem:[%s183 + $0x34] sm:$0xf]
        %v232 = vld [vmem:[%s183 + $0x38] sm:$0xf]
        %v233 = vld [vmem:[%s183 + $0x3c] sm:$0xf]
        %v234 = vld [vmem:[%s183 + $0x40] sm:$0xf]
        %v235 = vld [vmem:[%s183 + $0x44] sm:$0xf]
        %v236 = vld [vmem:[%s183 + $0x48] sm:$0xf]
        %v237 = vld [vmem:[%s183 + $0x4c] sm:$0xf]
        %v238 = vld [vmem:[%s183 + $0x50] sm:$0xf]
        %v239 = vld [vmem:[%s183 + $0x54] sm:$0xf]
        %v240 = vld [vmem:[%s183 + $0x58] sm:$0xf]
        %v241 = vld [vmem:[%s183 + $0x5c] sm:$0xf]
        %v242 = vld [vmem:[%s183 + $0x60] sm:$0xf]
        %v243 = vld [vmem:[%s183 + $0x64] sm:$0xf]
        %v244 = vld [vmem:[%s183 + $0x68] sm:$0xf]
        %v245 = vld [vmem:[%s183 + $0x6c] sm:$0xf]
        %v246 = vld [vmem:[%s183 + $0x70] sm:$0xf]
        %v247 = vld [vmem:[%s183 + $0x74] sm:$0xf]
        %v248 = vld [vmem:[%s183 + $0x78] sm:$0xf]
        %v249 = vld [vmem:[%s183 + $0x7c] sm:$0xf]
        %v250 = vld [vmem:[%s193] sm:$0xf]
        %v251 = vld [vmem:[%s193 + $0x4] sm:$0xf]
        %v252 = vld [vmem:[%s193 + $0x8] sm:$0xf]
        %v253 = vld [vmem:[%s193 + $0xc] sm:$0xf]
        %v254 = vld [vmem:[%s193 + $0x10] sm:$0xf]
        %v255 = vld [vmem:[%s193 + $0x14] sm:$0xf]
        %v256 = vld [vmem:[%s193 + $0x18] sm:$0xf]
        %v257 = vld [vmem:[%s193 + $0x1c] sm:$0xf]
        %v258 = vld [vmem:[%s193 + $0x20] sm:$0xf]
        %v259 = vld [vmem:[%s193 + $0x24] sm:$0xf]
        %v260 = vld [vmem:[%s193 + $0x28] sm:$0xf]
        %v261 = vld [vmem:[%s193 + $0x2c] sm:$0xf]
        %v262 = vld [vmem:[%s193 + $0x30] sm:$0xf]
        %v263 = vld [vmem:[%s193 + $0x34] sm:$0xf]
        %v264 = vld [vmem:[%s193 + $0x38] sm:$0xf]
        %v265 = vld [vmem:[%s193 + $0x3c] sm:$0xf]
        %v298 = vunpack.c.l.b16 %v218
        %v299 = vunpack.c.l.b16 %v219
        %v300 = vunpack.c.l.b16 %v220
        %v301 = vunpack.c.l.b16 %v221
        %v302 = vunpack.c.l.b16 %v222
        %v303 = vunpack.c.l.b16 %v223
        %v304 = vunpack.c.l.b16 %v224
        %v305 = vunpack.c.l.b16 %v225
        %v306 = vunpack.c.l.b16 %v226
        %v307 = vunpack.c.l.b16 %v227
        %v308 = vunpack.c.l.b16 %v228
        %v309 = vunpack.c.l.b16 %v229
        %v310 = vunpack.c.l.b16 %v230
        %v311 = vunpack.c.l.b16 %v231
        %v312 = vunpack.c.l.b16 %v232
        %v313 = vunpack.c.l.b16 %v233
        %v314 = vunpack.c.l.b16 %v234
        %v315 = vunpack.c.l.b16 %v235
        %v316 = vunpack.c.l.b16 %v236
        %v317 = vunpack.c.l.b16 %v237
        %v318 = vunpack.c.l.b16 %v238
        %v319 = vunpack.c.l.b16 %v239
        %v320 = vunpack.c.l.b16 %v240
        %v321 = vunpack.c.l.b16 %v241
        %v322 = vunpack.c.l.b16 %v242
        %v323 = vunpack.c.l.b16 %v243
        %v324 = vunpack.c.l.b16 %v244
        %v325 = vunpack.c.l.b16 %v245
        %v326 = vunpack.c.l.b16 %v246
        %v327 = vunpack.c.l.b16 %v247
        %v328 = vunpack.c.l.b16 %v248
        %v329 = vunpack.c.l.b16 %v249
        %v330 = vpack.c.b16 %v299, %v298
        %v331 = vpack.c.b16 %v301, %v300
        %v332 = vpack.c.b16 %v303, %v302
        %v333 = vpack.c.b16 %v305, %v304
        %v334 = vpack.c.b16 %v307, %v306
        %v335 = vpack.c.b16 %v309, %v308
        %v336 = vpack.c.b16 %v311, %v310
        %v337 = vpack.c.b16 %v313, %v312
        %v338 = vpack.c.b16 %v315, %v314
        %v339 = vpack.c.b16 %v317, %v316
        %v340 = vpack.c.b16 %v319, %v318
        %v341 = vpack.c.b16 %v321, %v320
        %v342 = vpack.c.b16 %v323, %v322
        %v343 = vpack.c.b16 %v325, %v324
        %v344 = vpack.c.b16 %v327, %v326
        %v345 = vpack.c.b16 %v329, %v328
        %v378 = vunpack.c.l.b16 %v250
        %v379 = vunpack.c.l.b16 %v251
        %v380 = vunpack.c.l.b16 %v252
        %v381 = vunpack.c.l.b16 %v253
        %v382 = vunpack.c.l.b16 %v254
        %v383 = vunpack.c.l.b16 %v255
        %v384 = vunpack.c.l.b16 %v256
        %v385 = vunpack.c.l.b16 %v257
        %v386 = vunpack.c.l.b16 %v258
        %v387 = vunpack.c.l.b16 %v259
        %v388 = vunpack.c.l.b16 %v260
        %v389 = vunpack.c.l.b16 %v261
        %v390 = vunpack.c.l.b16 %v262
        %v391 = vunpack.c.l.b16 %v263
        %v392 = vunpack.c.l.b16 %v264
        %v393 = vunpack.c.l.b16 %v265
        %v394 = vpack.c.b16 %v379, %v378
        %v395 = vpack.c.b16 %v381, %v380
        %v396 = vpack.c.b16 %v383, %v382
        %v397 = vpack.c.b16 %v385, %v384
        %v398 = vpack.c.b16 %v387, %v386
        %v399 = vpack.c.b16 %v389, %v388
        %v400 = vpack.c.b16 %v391, %v390
        %v401 = vpack.c.b16 %v393, %v392
        %410 = vmatpush.bf16.msra.mxu0 %v401
        %411 = vmatpush.bf16.msra.mxu0 %v400
        %412 = vmatpush.bf16.msra.mxu0 %v399
        %413 = vmatpush.bf16.msra.mxu0 %v398
        %414 = vmatpush.bf16.msra.mxu0 %v397
        %415 = vmatpush.bf16.msra.mxu0 %v396
        %416 = vmatpush.bf16.msra.mxu0 %v395
        %417 = vmatpush.bf16.msra.mxu0 %v394
        %418 = vmatmul.bf16.gmra.mxu0 %v330
        %v419 = vpop.f32.mrf.mxu0
        %v420 = vadd.f32 0.0, %v419
        %v421 = vpop.f32.mrf.mxu0
        %v422 = vadd.f32 0.0, %v421
        %423 = vmatmul.bf16.gmra.mxu0 %v331
        %v424 = vpop.f32.mrf.mxu0
        %v425 = vadd.f32 0.0, %v424
        %v426 = vpop.f32.mrf.mxu0
        %v427 = vadd.f32 0.0, %v426
        %428 = vmatmul.bf16.gmra.mxu0 %v332
        %v429 = vpop.f32.mrf.mxu0
        %v430 = vadd.f32 0.0, %v429
        %v431 = vpop.f32.mrf.mxu0
        %v432 = vadd.f32 0.0, %v431
        %433 = vmatmul.bf16.gmra.mxu0 %v333
        %v434 = vpop.f32.mrf.mxu0
        %v435 = vadd.f32 0.0, %v434
        %v436 = vpop.f32.mrf.mxu0
        %v437 = vadd.f32 0.0, %v436
        %438 = vmatmul.bf16.gmra.mxu0 %v334
        %v439 = vpop.f32.mrf.mxu0
        %v440 = vadd.f32 0.0, %v439
        %v441 = vpop.f32.mrf.mxu0
        %v442 = vadd.f32 0.0, %v441
        %443 = vmatmul.bf16.gmra.mxu0 %v335
        %v444 = vpop.f32.mrf.mxu0
        %v445 = vadd.f32 0.0, %v444
        %v446 = vpop.f32.mrf.mxu0
        %v447 = vadd.f32 0.0, %v446
        %448 = vmatmul.bf16.gmra.mxu0 %v336
        %v449 = vpop.f32.mrf.mxu0
        %v450 = vadd.f32 0.0, %v449
        %v451 = vpop.f32.mrf.mxu0
        %v452 = vadd.f32 0.0, %v451
        %453 = vmatmul.bf16.gmra.mxu0 %v337
        %v454 = vpop.f32.mrf.mxu0
        %v455 = vadd.f32 0.0, %v454
        %v456 = vpop.f32.mrf.mxu0
        %v457 = vadd.f32 0.0, %v456
        %458 = vmatmul.bf16.gmra.mxu0 %v338
        %v459 = vpop.f32.mrf.mxu0
        %v460 = vadd.f32 0.0, %v459
        %v461 = vpop.f32.mrf.mxu0
        %v462 = vadd.f32 0.0, %v461
        %463 = vmatmul.bf16.gmra.mxu0 %v339
        %v464 = vpop.f32.mrf.mxu0
        %v465 = vadd.f32 0.0, %v464
        %v466 = vpop.f32.mrf.mxu0
        %v467 = vadd.f32 0.0, %v466
        %468 = vmatmul.bf16.gmra.mxu0 %v340
        %v469 = vpop.f32.mrf.mxu0
        %v470 = vadd.f32 0.0, %v469
        %v471 = vpop.f32.mrf.mxu0
        %v472 = vadd.f32 0.0, %v471
        %473 = vmatmul.bf16.gmra.mxu0 %v341
        %v474 = vpop.f32.mrf.mxu0
        %v475 = vadd.f32 0.0, %v474
        %v476 = vpop.f32.mrf.mxu0
        %v477 = vadd.f32 0.0, %v476
        %478 = vmatmul.bf16.gmra.mxu0 %v342
        %v479 = vpop.f32.mrf.mxu0
        %v480 = vadd.f32 0.0, %v479
        %v481 = vpop.f32.mrf.mxu0
        %v482 = vadd.f32 0.0, %v481
        %483 = vmatmul.bf16.gmra.mxu0 %v343
        %v484 = vpop.f32.mrf.mxu0
        %v485 = vadd.f32 0.0, %v484
        %v486 = vpop.f32.mrf.mxu0
        %v487 = vadd.f32 0.0, %v486
        %488 = vmatmul.bf16.gmra.mxu0 %v344
        %v489 = vpop.f32.mrf.mxu0
        %v490 = vadd.f32 0.0, %v489
        %v491 = vpop.f32.mrf.mxu0
        %v492 = vadd.f32 0.0, %v491
        %493 = vmatmul.bf16.gmra.mxu0 %v345
        %v494 = vpop.f32.mrf.mxu0
        %v495 = vadd.f32 0.0, %v494
        %v496 = vpop.f32.mrf.mxu0
        %v497 = vadd.f32 0.0, %v496
        %498 = vdwg.mxu0
        %p499 = scmp.eq.s32.totalorder %s25, 0
        // Predicated region
        $region37: #{tpu_custom_call.1} parent=27 // pred_check
          %p500 = pneg %p499
        $region38: #{tpu_custom_call.1} parent=27 // pred_check_branch
          %502 = sbr.rel (%p500) target = $region40
        $region39: #{tpu_custom_call.1} parent=27 // pred_region
          %503 = vst [vmem:[#allocation2] sm:$0xff] 0.0
          %504 = vst [vmem:[#allocation2 + $0x8] sm:$0xff] 0.0
          %505 = vst [vmem:[#allocation2 + $0x10] sm:$0xff] 0.0
          %506 = vst [vmem:[#allocation2 + $0x18] sm:$0xff] 0.0
          %507 = vst [vmem:[#allocation2 + $0x20] sm:$0xff] 0.0
          %508 = vst [vmem:[#allocation2 + $0x28] sm:$0xff] 0.0
          %509 = vst [vmem:[#allocation2 + $0x30] sm:$0xff] 0.0
          %510 = vst [vmem:[#allocation2 + $0x38] sm:$0xff] 0.0
          %511 = vst [vmem:[#allocation2 + $0x40] sm:$0xff] 0.0
          %512 = vst [vmem:[#allocation2 + $0x48] sm:$0xff] 0.0
          %513 = vst [vmem:[#allocation2 + $0x50] sm:$0xff] 0.0
          %514 = vst [vmem:[#allocation2 + $0x58] sm:$0xff] 0.0
          %515 = vst [vmem:[#allocation2 + $0x60] sm:$0xff] 0.0
          %516 = vst [vmem:[#allocation2 + $0x68] sm:$0xff] 0.0
          %517 = vst [vmem:[#allocation2 + $0x70] sm:$0xff] 0.0
          %518 = vst [vmem:[#allocation2 + $0x78] sm:$0xff] 0.0
          %519 = vst [vmem:[#allocation2 + $0x80] sm:$0xff] 0.0
          %520 = vst [vmem:[#allocation2 + $0x88] sm:$0xff] 0.0
          %521 = vst [vmem:[#allocation2 + $0x90] sm:$0xff] 0.0
          %522 = vst [vmem:[#allocation2 + $0x98] sm:$0xff] 0.0
          %523 = vst [vmem:[#allocation2 + $0xa0] sm:$0xff] 0.0
          %524 = vst [vmem:[#allocation2 + $0xa8] sm:$0xff] 0.0
          %525 = vst [vmem:[#allocation2 + $0xb0] sm:$0xff] 0.0
          %526 = vst [vmem:[#allocation2 + $0xb8] sm:$0xff] 0.0
          %527 = vst [vmem:[#allocation2 + $0xc0] sm:$0xff] 0.0
          %528 = vst [vmem:[#allocation2 + $0xc8] sm:$0xff] 0.0
          %529 = vst [vmem:[#allocation2 + $0xd0] sm:$0xff] 0.0
          %530 = vst [vmem:[#allocation2 + $0xd8] sm:$0xff] 0.0
          %531 = vst [vmem:[#allocation2 + $0xe0] sm:$0xff] 0.0
          %532 = vst [vmem:[#allocation2 + $0xe8] sm:$0xff] 0.0
          %533 = vst [vmem:[#allocation2 + $0xf0] sm:$0xff] 0.0
          %534 = vst [vmem:[#allocation2 + $0xf8] sm:$0xff] 0.0
        $region40: #{tpu_custom_call.1} parent=27 // pred_fallthru
          _
        %v535 = vld [vmem:[#allocation2] sm:$0xff]
        %v536 = vld [vmem:[#allocation2 + $0x8] sm:$0xff]
        %v537 = vld [vmem:[#allocation2 + $0x10] sm:$0xff]
        %v538 = vld [vmem:[#allocation2 + $0x18] sm:$0xff]
        %v539 = vld [vmem:[#allocation2 + $0x20] sm:$0xff]
        %v540 = vld [vmem:[#allocation2 + $0x28] sm:$0xff]
        %v541 = vld [vmem:[#allocation2 + $0x30] sm:$0xff]
        %v542 = vld [vmem:[#allocation2 + $0x38] sm:$0xff]
        %v543 = vld [vmem:[#allocation2 + $0x40] sm:$0xff]
        %v544 = vld [vmem:[#allocation2 + $0x48] sm:$0xff]
        %v545 = vld [vmem:[#allocation2 + $0x50] sm:$0xff]
        %v546 = vld [vmem:[#allocation2 + $0x58] sm:$0xff]
        %v547 = vld [vmem:[#allocation2 + $0x60] sm:$0xff]
        %v548 = vld [vmem:[#allocation2 + $0x68] sm:$0xff]
        %v549 = vld [vmem:[#allocation2 + $0x70] sm:$0xff]
        %v550 = vld [vmem:[#allocation2 + $0x78] sm:$0xff]
        %v551 = vld [vmem:[#allocation2 + $0x80] sm:$0xff]
        %v552 = vld [vmem:[#allocation2 + $0x88] sm:$0xff]
        %v553 = vld [vmem:[#allocation2 + $0x90] sm:$0xff]
        %v554 = vld [vmem:[#allocation2 + $0x98] sm:$0xff]
        %v555 = vld [vmem:[#allocation2 + $0xa0] sm:$0xff]
        %v556 = vld [vmem:[#allocation2 + $0xa8] sm:$0xff]
        %v557 = vld [vmem:[#allocation2 + $0xb0] sm:$0xff]
        %v558 = vld [vmem:[#allocation2 + $0xb8] sm:$0xff]
        %v559 = vld [vmem:[#allocation2 + $0xc0] sm:$0xff]
        %v560 = vld [vmem:[#allocation2 + $0xc8] sm:$0xff]
        %v561 = vld [vmem:[#allocation2 + $0xd0] sm:$0xff]
        %v562 = vld [vmem:[#allocation2 + $0xd8] sm:$0xff]
        %v563 = vld [vmem:[#allocation2 + $0xe0] sm:$0xff]
        %v564 = vld [vmem:[#allocation2 + $0xe8] sm:$0xff]
        %v565 = vld [vmem:[#allocation2 + $0xf0] sm:$0xff]
        %v566 = vld [vmem:[#allocation2 + $0xf8] sm:$0xff]
        %v567 = vadd.f32 %v535, %v420
        %v568 = vadd.f32 %v536, %v422
        %v569 = vadd.f32 %v537, %v425
        %v570 = vadd.f32 %v538, %v427
        %v571 = vadd.f32 %v539, %v430
        %v572 = vadd.f32 %v540, %v432
        %v573 = vadd.f32 %v541, %v435
        %v574 = vadd.f32 %v542, %v437
        %v575 = vadd.f32 %v543, %v440
        %v576 = vadd.f32 %v544, %v442
        %v577 = vadd.f32 %v545, %v445
        %v578 = vadd.f32 %v546, %v447
        %v579 = vadd.f32 %v547, %v450
        %v580 = vadd.f32 %v548, %v452
        %v581 = vadd.f32 %v549, %v455
        %v582 = vadd.f32 %v550, %v457
        %v583 = vadd.f32 %v551, %v460
        %v584 = vadd.f32 %v552, %v462
        %v585 = vadd.f32 %v553, %v465
        %v586 = vadd.f32 %v554, %v467
        %v587 = vadd.f32 %v555, %v470
        %v588 = vadd.f32 %v556, %v472
        %v589 = vadd.f32 %v557, %v475
        %v590 = vadd.f32 %v558, %v477
        %v591 = vadd.f32 %v559, %v480
        %v592 = vadd.f32 %v560, %v482
        %v593 = vadd.f32 %v561, %v485
        %v594 = vadd.f32 %v562, %v487
        %v595 = vadd.f32 %v563, %v490
        %v596 = vadd.f32 %v564, %v492
        %v597 = vadd.f32 %v565, %v495
        %v598 = vadd.f32 %v566, %v497
        %599 = vst [vmem:[#allocation2] sm:$0xff] %v567
        %600 = vst [vmem:[#allocation2 + $0x8] sm:$0xff] %v568
        %601 = vst [vmem:[#allocation2 + $0x10] sm:$0xff] %v569
        %602 = vst [vmem:[#allocation2 + $0x18] sm:$0xff] %v570
        %603 = vst [vmem:[#allocation2 + $0x20] sm:$0xff] %v571
        %604 = vst [vmem:[#allocation2 + $0x28] sm:$0xff] %v572
        %605 = vst [vmem:[#allocation2 + $0x30] sm:$0xff] %v573
        %606 = vst [vmem:[#allocation2 + $0x38] sm:$0xff] %v574
        %607 = vst [vmem:[#allocation2 + $0x40] sm:$0xff] %v575
        %608 = vst [vmem:[#allocation2 + $0x48] sm:$0xff] %v576
        %609 = vst [vmem:[#allocation2 + $0x50] sm:$0xff] %v577
        %610 = vst [vmem:[#allocation2 + $0x58] sm:$0xff] %v578
        %611 = vst [vmem:[#allocation2 + $0x60] sm:$0xff] %v579
        %612 = vst [vmem:[#allocation2 + $0x68] sm:$0xff] %v580
        %613 = vst [vmem:[#allocation2 + $0x70] sm:$0xff] %v581
        %614 = vst [vmem:[#allocation2 + $0x78] sm:$0xff] %v582
        %615 = vst [vmem:[#allocation2 + $0x80] sm:$0xff] %v583
        %616 = vst [vmem:[#allocation2 + $0x88] sm:$0xff] %v584
        %617 = vst [vmem:[#allocation2 + $0x90] sm:$0xff] %v585
        %618 = vst [vmem:[#allocation2 + $0x98] sm:$0xff] %v586
        %619 = vst [vmem:[#allocation2 + $0xa0] sm:$0xff] %v587
        %620 = vst [vmem:[#allocation2 + $0xa8] sm:$0xff] %v588
        %621 = vst [vmem:[#allocation2 + $0xb0] sm:$0xff] %v589
        %622 = vst [vmem:[#allocation2 + $0xb8] sm:$0xff] %v590
        %623 = vst [vmem:[#allocation2 + $0xc0] sm:$0xff] %v591
        %624 = vst [vmem:[#allocation2 + $0xc8] sm:$0xff] %v592
        %625 = vst [vmem:[#allocation2 + $0xd0] sm:$0xff] %v593
        %626 = vst [vmem:[#allocation2 + $0xd8] sm:$0xff] %v594
        %627 = vst [vmem:[#allocation2 + $0xe0] sm:$0xff] %v595
        %628 = vst [vmem:[#allocation2 + $0xe8] sm:$0xff] %v596
        %629 = vst [vmem:[#allocation2 + $0xf0] sm:$0xff] %v597
        %630 = vst [vmem:[#allocation2 + $0xf8] sm:$0xff] %v598
        %p631 = scmp.eq.s32.totalorder %s25, 3
        // Predicated region
        $region41: #{tpu_custom_call.1} parent=27 // pred_check
          %p632 = pneg %p631
        $region42: #{tpu_custom_call.1} parent=27 // pred_check_branch
          %634 = sbr.rel (%p632) target = $region44
        $region43: #{tpu_custom_call.1} parent=27 // pred_region
          %v635 = vld [vmem:[#allocation2] sm:$0xff]
          %v636 = vld [vmem:[#allocation2 + $0x8] sm:$0xff]
          %v637 = vld [vmem:[#allocation2 + $0x10] sm:$0xff]
          %v638 = vld [vmem:[#allocation2 + $0x18] sm:$0xff]
          %v639 = vld [vmem:[#allocation2 + $0x20] sm:$0xff]
          %v640 = vld [vmem:[#allocation2 + $0x28] sm:$0xff]
          %v641 = vld [vmem:[#allocation2 + $0x30] sm:$0xff]
          %v642 = vld [vmem:[#allocation2 + $0x38] sm:$0xff]
          %v643 = vld [vmem:[#allocation2 + $0x40] sm:$0xff]
          %v644 = vld [vmem:[#allocation2 + $0x48] sm:$0xff]
          %v645 = vld [vmem:[#allocation2 + $0x50] sm:$0xff]
          %v646 = vld [vmem:[#allocation2 + $0x58] sm:$0xff]
          %v647 = vld [vmem:[#allocation2 + $0x60] sm:$0xff]
          %v648 = vld [vmem:[#allocation2 + $0x68] sm:$0xff]
          %v649 = vld [vmem:[#allocation2 + $0x70] sm:$0xff]
          %v650 = vld [vmem:[#allocation2 + $0x78] sm:$0xff]
          %v651 = vld [vmem:[#allocation2 + $0x80] sm:$0xff]
          %v652 = vld [vmem:[#allocation2 + $0x88] sm:$0xff]
          %v653 = vld [vmem:[#allocation2 + $0x90] sm:$0xff]
          %v654 = vld [vmem:[#allocation2 + $0x98] sm:$0xff]
          %v655 = vld [vmem:[#allocation2 + $0xa0] sm:$0xff]
          %v656 = vld [vmem:[#allocation2 + $0xa8] sm:$0xff]
          %v657 = vld [vmem:[#allocation2 + $0xb0] sm:$0xff]
          %v658 = vld [vmem:[#allocation2 + $0xb8] sm:$0xff]
          %v659 = vld [vmem:[#allocation2 + $0xc0] sm:$0xff]
          %v660 = vld [vmem:[#allocation2 + $0xc8] sm:$0xff]
          %v661 = vld [vmem:[#allocation2 + $0xd0] sm:$0xff]
          %v662 = vld [vmem:[#allocation2 + $0xd8] sm:$0xff]
          %v663 = vld [vmem:[#allocation2 + $0xe0] sm:$0xff]
          %v664 = vld [vmem:[#allocation2 + $0xe8] sm:$0xff]
          %v665 = vld [vmem:[#allocation2 + $0xf0] sm:$0xff]
          %v666 = vld [vmem:[#allocation2 + $0xf8] sm:$0xff]
          %667 = vst [vmem:[#allocation8] sm:$0xff] %v635
          %668 = vst [vmem:[#allocation8 + $0x8] sm:$0xff] %v636
          %669 = vst [vmem:[#allocation8 + $0x10] sm:$0xff] %v637
          %670 = vst [vmem:[#allocation8 + $0x18] sm:$0xff] %v638
          %671 = vst [vmem:[#allocation8 + $0x20] sm:$0xff] %v639
          %672 = vst [vmem:[#allocation8 + $0x28] sm:$0xff] %v640
          %673 = vst [vmem:[#allocation8 + $0x30] sm:$0xff] %v641
          %674 = vst [vmem:[#allocation8 + $0x38] sm:$0xff] %v642
          %675 = vst [vmem:[#allocation8 + $0x40] sm:$0xff] %v643
          %676 = vst [vmem:[#allocation8 + $0x48] sm:$0xff] %v644
          %677 = vst [vmem:[#allocation8 + $0x50] sm:$0xff] %v645
          %678 = vst [vmem:[#allocation8 + $0x58] sm:$0xff] %v646
          %679 = vst [vmem:[#allocation8 + $0x60] sm:$0xff] %v647
          %680 = vst [vmem:[#allocation8 + $0x68] sm:$0xff] %v648
          %681 = vst [vmem:[#allocation8 + $0x70] sm:$0xff] %v649
          %682 = vst [vmem:[#allocation8 + $0x78] sm:$0xff] %v650
          %683 = vst [vmem:[#allocation8 + $0x80] sm:$0xff] %v651
          %684 = vst [vmem:[#allocation8 + $0x88] sm:$0xff] %v652
          %685 = vst [vmem:[#allocation8 + $0x90] sm:$0xff] %v653
          %686 = vst [vmem:[#allocation8 + $0x98] sm:$0xff] %v654
          %687 = vst [vmem:[#allocation8 + $0xa0] sm:$0xff] %v655
          %688 = vst [vmem:[#allocation8 + $0xa8] sm:$0xff] %v656
          %689 = vst [vmem:[#allocation8 + $0xb0] sm:$0xff] %v657
          %690 = vst [vmem:[#allocation8 + $0xb8] sm:$0xff] %v658
          %691 = vst [vmem:[#allocation8 + $0xc0] sm:$0xff] %v659
          %692 = vst [vmem:[#allocation8 + $0xc8] sm:$0xff] %v660
          %693 = vst [vmem:[#allocation8 + $0xd0] sm:$0xff] %v661
          %694 = vst [vmem:[#allocation8 + $0xd8] sm:$0xff] %v662
          %695 = vst [vmem:[#allocation8 + $0xe0] sm:$0xff] %v663
          %696 = vst [vmem:[#allocation8 + $0xe8] sm:$0xff] %v664
          %697 = vst [vmem:[#allocation8 + $0xf0] sm:$0xff] %v665
          %698 = vst [vmem:[#allocation8 + $0xf8] sm:$0xff] %v666
        $region44: #{tpu_custom_call.1} parent=27 // pred_fallthru
          _
        // Predicated region
        $region45: #{tpu_custom_call.1} parent=27 // pred_check
          %p699 = pneg %p104
        $region46: #{tpu_custom_call.1} parent=27 // pred_check_branch
          %701 = sbr.rel (%p699) target = $region48
        $region47: #{tpu_custom_call.1} parent=27 // pred_region
          %s702 = smul.u32 32, %s24
          %704 = vsyncadd [#allocation5], 0
          %s705 = smul.addr %s702, 8
          %s706 = scalar_lea.hbm %s2, %s705
          %s707 = sshll.u32 [#allocation8], 4
          %s708 = int_to_ptr.vmem [resolvable:$true] %s707
          %s709 = sshll.u32 %s706, 4
          %s710 = int_to_ptr.hbm [resolvable:$true] %s709
          %715 = dma.vmem_to_hbm [thread:$0]  %s708, 4096, %s710, [#allocation5], 128, 128, 8
        $region48: #{tpu_custom_call.1} parent=27 // pred_fallthru
          _
        // Predicated region
        $region49: #{tpu_custom_call.1} parent=27 // pred_check
          %p716 = pneg %p104
        $region50: #{tpu_custom_call.1} parent=27 // pred_check_branch
          %718 = sbr.rel (%p716) target = $region52
        $region51: #{tpu_custom_call.1} parent=27 // pred_region
          %720 = dma.done [#allocation5], 4096
        $region52: #{tpu_custom_call.1} parent=27 // pred_fallthru
          _
      $region28: #{tpu_custom_call.1} parent=5 // pred_fallthru
        _
      %p721 = scmp.le.s32.totalorder 2, %s15
      // Predicated region
      $region53: #{tpu_custom_call.1} parent=5 // pred_check
        %p722 = pneg %p721
      $region54: #{tpu_custom_call.1} parent=5 // pred_check_branch
        %724 = sbr.rel (%p722) target = $region56
      $region55: #{tpu_custom_call.1} parent=5 // pred_region
        %s725 = ssub.s32 %s15, 2
      $region56: #{tpu_custom_call.1} parent=5 // pred_fallthru
        _
    $region6: #{tpu_custom_call.1} parent=1 // loop_footer
      %s19 = sadd.s32 1, %s15
    $region7: #{tpu_custom_call.1} parent=1 // loop_footer_branch
      %14 = sbr.rel target = $region3
    $region8: #{tpu_custom_call.1} parent=1 // loop_exit
      _
    %726 = vsyncpa [#allocation4], 1
    %s727 = scalar_lea.sflag [#allocation4], 1
    %728 = vsyncpa %s727, 1
    %729 = vsyncpa [#allocation7], 1
    %s730 = scalar_lea.sflag [#allocation7], 1
    %731 = vsyncpa %s730, 1
    %732 = vsyncpa [#allocation5], 1
    %s733 = scalar_lea.sflag [#allocation5], 1
    %734 = vsyncpa %s733, 1

</llo_original>
